<compile_context>
chip_gen: v6e
topology: v6e:2x2x1
jax: 0.10.0
libtpu: 0.0.40
codegen_flags: <defaults>
</compile_context>

<pallas_src>
import numpy as np
import jax
import jax.numpy as jnp
from jax.experimental import pallas as pl
from jax.experimental.pallas import tpu as pltpu  # noqa: F401  (TPU backend)

LANE = 128      # lane width (last dim of a vreg tile)
SUBLANE = 8     # sublane width (second-to-last dim)


def _round_up(x, m):
    return (x + m - 1) // m * m


# ---------------------------------------------------------------------------
# Fused Pallas kernel: the entire BadNets forward is one matmul (bias folded
# into the weight via the constant-1 input column).
# ---------------------------------------------------------------------------
def _badnets_kernel(x_ref, w_ref, o_ref):
    o_ref[...] = jnp.dot(x_ref[...], w_ref[...],
                         preferred_element_type=jnp.float32)


def badnets_forward(x, packed):
    """x: (B, Cin, H, W) float32 -> logits (B, 10)."""
    B = x.shape[0]
    w = packed["w_total"]                      # (128, 128) f32, bias folded in
    k1 = packed["k_real"]                      # real flattened input dim (100)
    k1p = w.shape[0]                           # padded K (128)
    n_out = w.shape[1]                         # padded logits dim (128)
    mp = max(SUBLANE, _round_up(B, SUBLANE))   # sublane-aligned row count

    # NCHW flatten (matches torch ordering used for the Toeplitz packing),
    # zero-pad rows -> mp and cols -> k1p, and set the constant-1 column that
    # picks up the folded bias row of w.
    xf = x.reshape(B, -1).astype(jnp.float32)
    xp = (jnp.zeros((mp, k1p), jnp.float32)
          .at[:B, :k1].set(xf)
          .at[:B, k1].set(1.0))

    out = pl.pallas_call(
        _badnets_kernel,
        out_shape=jax.ShapeDtypeStruct((mp, n_out), jnp.float32),
        # Gridless: both operands are single full VMEM blocks (~70 KiB total).
        # At realistic batch sizes: grid=(M // tm,) with tm >= 512,
        # dimension_semantics=("parallel",) (needed for both v7x TCs), weight
        # index_map lambda i: (0, 0) so it stays VMEM-resident, and the VMEM
        # budget sized against v7x's 32 MiB scoped default.
        in_specs=[pl.BlockSpec(xp.shape, lambda: (0, 0)),
                  pl.BlockSpec(w.shape, lambda: (0, 0))],
        out_specs=pl.BlockSpec((mp, n_out), lambda: (0, 0)),
    )(xp, w)
    return out[:B, :packed["num_classes"]]


# ---------------------------------------------------------------------------
# One-time host-side weight packing: unroll conv1 (Toeplitz), densify conv2
# (1x1 output), then collapse all five affine layers into one W_total/b_total.
# ---------------------------------------------------------------------------
def pack_params(p, in_channels, out_channels, height, width):
    kh = kw = 3
    oh1, ow1 = height - kh + 1, width - kw + 1
    oh2, ow2 = oh1 - kh + 1, ow1 - kw + 1
    # fc1 = Linear(out_channels, 10) requires flattened conv2 output to have
    # exactly `out_channels` features, i.e. conv2 output spatial must be 1x1.
    assert (oh2, ow2) == (1, 1), "BadNets structure implies a 5x5 input"

    w1 = np.asarray(p["w1"], np.float64)   # (Cout, Cin, 3, 3)
    w2 = np.asarray(p["w2"], np.float64)   # (Cout, Cout, 3, 3)

    # conv1 as its exact unrolled (Toeplitz) matrix:
    #   x.reshape(B, Cin*H*W) @ w1u == conv1(x) flattened NCHW, column index
    #   f = cout*(OH1*OW1) + oi*OW1 + oj.
    k1 = in_channels * height * width
    f1 = out_channels * oh1 * ow1
    w1u = np.zeros((k1, f1), np.float64)
    for ki in range(kh):
        for kj in range(kw):
            tap = w1[:, :, ki, kj].T        # (Cin, Cout)
            for oi in range(oh1):
                for oj in range(ow1):
                    rows = (np.arange(in_channels) * height * width
                            + (oi + ki) * width + (oj + kj))
                    cols = (np.arange(out_channels) * (oh1 * ow1)
                            + oi * ow1 + oj)
                    w1u[rows[:, None], cols[None, :]] = tap
    b1u = np.repeat(np.asarray(p["b1"], np.float64), oh1 * ow1)

    # conv2 with a 1x1 output is a plain dense layer on the flattened conv1
    # output (row order cin2*9 + ki*3 + kj matches the column order above).
    w2u = w2.reshape(out_channels, out_channels * kh * kw).T    # (f1, Cout)
    b2u = np.asarray(p["b2"], np.float64)

    w3u = np.asarray(p["fc1_w"], np.float64).T                  # (Cout, 10)
    b3u = np.asarray(p["fc1_b"], np.float64)
    w4u = np.asarray(p["fc2_w"], np.float64).T                  # (10, 10)
    b4u = np.asarray(p["fc2_b"], np.float64)
    w5u = np.asarray(p["fc3_w"], np.float64).T                  # (10, 10)
    b5u = np.asarray(p["fc3_b"], np.float64)

    # No nonlinearities anywhere in the module -> the whole forward is one
    # affine map.  Fold the chain once on the host.
    w_total = w1u @ w2u @ w3u @ w4u @ w5u                       # (k1, 10)
    b_total = ((((b1u @ w2u + b2u) @ w3u + b3u) @ w4u + b4u) @ w5u + b5u)

    num_classes = w_total.shape[1]
    k1p = _round_up(k1 + 1, LANE)          # +1 slot for the folded-bias row
    n_out = _round_up(num_classes, LANE)

    wp = np.zeros((k1p, n_out), np.float32)
    wp[:k1, :num_classes] = w_total.astype(np.float32)
    wp[k1, :num_classes] = b_total.astype(np.float32)           # bias row
    return {"w_total": jnp.asarray(wp),
            "k_real": k1,
            "num_classes": num_classes}


# ---------------------------------------------------------------------------
# Deterministic parameter init (PyTorch-style U(-1/sqrt(fan_in), +1/sqrt(fan_in)))
# ---------------------------------------------------------------------------
def init_params(key, in_channels, out_channels):
    ks = jax.random.split(key, 10)

    def uni(k, shape, fan_in):
        bound = 1.0 / jnp.sqrt(jnp.float32(fan_in))
        return jax.random.uniform(k, shape, jnp.float32, -bound, bound)

    return {
        "w1": uni(ks[0], (out_channels, in_channels, 3, 3), in_channels * 9),
        "b1": uni(ks[1], (out_channels,), in_channels * 9),
        "w2": uni(ks[2], (out_channels, out_channels, 3, 3), out_channels * 9),
        "b2": uni(ks[3], (out_channels,), out_channels * 9),
        "fc1_w": uni(ks[4], (10, out_channels), out_channels),
        "fc1_b": uni(ks[5], (10,), out_channels),
        "fc2_w": uni(ks[6], (10, 10), 10),
        "fc2_b": uni(ks[7], (10,), 10),
        "fc3_w": uni(ks[8], (10, 10), 10),
        "fc3_b": uni(ks[9], (10,), 10),
    }


# ---------------------------------------------------------------------------
# Pure-JAX reference (layered, mirrors the PyTorch module exactly)
# ---------------------------------------------------------------------------
def reference_forward(x, p):
    dn = ("NCHW", "OIHW", "NCHW")
    h = jax.lax.conv_general_dilated(x, p["w1"], (1, 1), "VALID",
                                     dimension_numbers=dn)
    h = h + p["b1"][None, :, None, None]
    h = jax.lax.conv_general_dilated(h, p["w2"], (1, 1), "VALID",
                                     dimension_numbers=dn)
    h = h + p["b2"][None, :, None, None]
    h = h.reshape(h.shape[0], -1)
    h = h @ p["fc1_w"].T + p["fc1_b"]
    h = h @ p["fc2_w"].T + p["fc2_b"]
    h = h @ p["fc3_w"].T + p["fc3_b"]
    return h


if __name__ == "__main__":
    key = jax.random.PRNGKey(0)
    pkey, xkey = jax.random.split(key)

    # fc1 = Linear(out_channels, 10) implies the conv stack collapses to a
    # 1x1 spatial map -> input spatial must be 5x5.
    batch, in_channels, out_channels = 2, 4, 8
    height = width = 5

    params = init_params(pkey, in_channels, out_channels)
    packed = pack_params(params, in_channels, out_channels, height, width)
    x = jax.random.normal(xkey, (batch, in_channels, height, width), jnp.float32)

    fwd = jax.jit(lambda xx: badnets_forward(xx, packed))
    out = jax.block_until_ready(fwd(x))

    ref = reference_forward(x, params)
    assert out.shape == (batch, 10), out.shape
    assert jnp.allclose(out, ref, atol=1e-3, rtol=1e-3), "mismatch vs reference"
    print("KERNEL_OK")
</pallas_src>

<mosaic_0001>
module attributes {stable_mosaic.version = 11 : i64} {
  func.func @_badnets_kernel(%arg0: memref<8x128xf32, #tpu.memory_space<vmem>>, %arg1: memref<128x128xf32, #tpu.memory_space<vmem>>, %arg2: memref<8x128xf32, #tpu.memory_space<vmem>>) attributes {dimension_semantics = [], scalar_prefetch = 0 : i64, scratch_operands = 0 : i64, tpu.core_type = #tpu.core_type<tc>} {
    %c0 = arith.constant 0 : index
    %c0_0 = arith.constant 0 : index
    %0 = vector.load %arg0[%c0, %c0_0] : memref<8x128xf32, #tpu.memory_space<vmem>>, vector<8x128xf32>
    %c0_1 = arith.constant 0 : index
    %c0_2 = arith.constant 0 : index
    %1 = vector.load %arg1[%c0_1, %c0_2] : memref<128x128xf32, #tpu.memory_space<vmem>>, vector<128x128xf32>
    %cst = arith.constant dense<0.000000e+00> : vector<8x128xf32>
    %2 = tpu.matmul %0, %1, %cst {dimension_numbers = #tpu.dot_dimension_numbers<[1], [0], [0], [1], [0, 0, 1, 1], [], []>} : vector<8x128xf32>, vector<128x128xf32>, vector<8x128xf32> -> vector<8x128xf32>
    %c0_3 = arith.constant 0 : index
    %c0_4 = arith.constant 0 : index
    %3 = vector.load %arg2[%c0_3, %c0_4] : memref<8x128xf32, #tpu.memory_space<vmem>>, vector<8x128xf32>
    tpu.vector_store %arg2[%c0_3, %c0_4], %2 {strides = array<i32>} : memref<8x128xf32, #tpu.memory_space<vmem>>, vector<8x128xf32>,
    return
  }
}

</mosaic_0001>

<llo_original>
// kernel: _lambda_.1
$region0: #{_lambda_.1}
  #allocation0 [shape = 'u32[]', space=smem, size = 0x4, offset = 0x4, fixed_abs, tag = 'smem constant byte address 0x4 - core index']
  #allocation1 [shape = 'u32[144,128]{1,0:T(1,128)}', space=vmem, size = 0x12000, scoped, tag = 'internal scratch']
  %s0 = inlined_call_operand.vmem [shape: f32[8,128], index: 0, kind: input, shape index: {}]
  %s1 = inlined_call_operand.vmem [shape: f32[128,128], index: 1, kind: input, shape index: {}]
  %s2 = inlined_call_operand.vmem [shape: f32[8,128], index: 2, kind: output, shape index: {}]
  %s3 = sld [smem:[#allocation0]]
  $region18: #{_lambda_.1} parent=0
    _
  %s5 = ssub.s32 1, %s3
  %s6 = scalar_select 0, %s5, %s3
  // Predicated region
  $region2: #{_lambda_.1} parent=0 // pred_check
    _
  $region3: #{_lambda_.1} parent=0 // pred_check_branch
    %8 = sbr.rel (0) target = $region5
  $region4: #{_lambda_.1} parent=0 // pred_region
    _
  $region5: #{_lambda_.1} parent=0 // pred_fallthru
    _
  // Predicated region
  $region6: #{_lambda_.1} parent=0 // pred_check
    _
  $region7: #{_lambda_.1} parent=0 // pred_check_branch
    %10 = sbr.rel (0) target = $region9
  $region8: #{_lambda_.1} parent=0 // pred_region
    _
  $region9: #{_lambda_.1} parent=0 // pred_fallthru
    _
  %v11 = vld [vmem:[%s0] sm:$0xff]
  %v12 = vld [vmem:[%s1] sm:$0xff]
  %v13 = vld [vmem:[%s1 + $0x8] sm:$0xff]
  %v14 = vld [vmem:[%s1 + $0x10] sm:$0xff]
  %v15 = vld [vmem:[%s1 + $0x18] sm:$0xff]
  %v16 = vld [vmem:[%s1 + $0x20] sm:$0xff]
  %v17 = vld [vmem:[%s1 + $0x28] sm:$0xff]
  %v18 = vld [vmem:[%s1 + $0x30] sm:$0xff]
  %v19 = vld [vmem:[%s1 + $0x38] sm:$0xff]
  %v20 = vld [vmem:[%s1 + $0x40] sm:$0xff]
  %v21 = vld [vmem:[%s1 + $0x48] sm:$0xff]
  %v22 = vld [vmem:[%s1 + $0x50] sm:$0xff]
  %v23 = vld [vmem:[%s1 + $0x58] sm:$0xff]
  %v24 = vld [vmem:[%s1 + $0x60] sm:$0xff]
  %v25 = vld [vmem:[%s1 + $0x68] sm:$0xff]
  %v26 = vld [vmem:[%s1 + $0x70] sm:$0xff]
  %v27 = vld [vmem:[%s1 + $0x78] sm:$0xff]
  %28 = vmatprep.subr.mxu0 0.0
  %29 = vmatpush1.msra.mxu0 %v27
  %30 = vmatprep.subr.mxu0 0.0
  %31 = vmatpush1.msra.mxu0 %v26
  %32 = vmatprep.subr.mxu0 0.0
  %33 = vmatpush1.msra.mxu0 %v25
  %34 = vmatprep.subr.mxu0 0.0
  %35 = vmatpush1.msra.mxu0 %v24
  %36 = vmatprep.subr.mxu0 0.0
  %37 = vmatpush1.msra.mxu0 %v23
  %38 = vmatprep.subr.mxu0 0.0
  %39 = vmatpush1.msra.mxu0 %v22
  %40 = vmatprep.subr.mxu0 0.0
  %41 = vmatpush1.msra.mxu0 %v21
  %42 = vmatprep.subr.mxu0 0.0
  %43 = vmatpush1.msra.mxu0 %v20
  %44 = vmatprep.subr.mxu0 0.0
  %45 = vmatpush1.msra.mxu0 %v19
  %46 = vmatprep.subr.mxu0 0.0
  %47 = vmatpush1.msra.mxu0 %v18
  %48 = vmatprep.subr.mxu0 0.0
  %49 = vmatpush1.msra.mxu0 %v17
  %50 = vmatprep.subr.mxu0 0.0
  %51 = vmatpush1.msra.mxu0 %v16
  %52 = vmatprep.subr.mxu0 0.0
  %53 = vmatpush1.msra.mxu0 %v15
  %54 = vmatprep.subr.mxu0 0.0
  %55 = vmatpush1.msra.mxu0 %v14
  %56 = vmatprep.subr.mxu0 0.0
  %57 = vmatpush1.msra.mxu0 %v13
  %58 = vmatprep.subr.mxu0 0.0
  %59 = vmatpush1.msra.mxu0 %v12
  %60 = vmatprep.subr.mxu0 0.0
  %61 = vmatpush2.msra.mxu0 0.0
  %62 = vmatprep.subr.mxu0 0.0
  %63 = vmatpush2.msra.mxu0 0.0
  %64 = vmatprep.subr.mxu0 0.0
  %65 = vmatpush2.msra.mxu0 0.0
  %66 = vmatprep.subr.mxu0 0.0
  %67 = vmatpush2.msra.mxu0 0.0
  %68 = vmatprep.subr.mxu0 0.0
  %69 = vmatpush2.msra.mxu0 0.0
  %70 = vmatprep.subr.mxu0 0.0
  %71 = vmatpush2.msra.mxu0 0.0
  %72 = vmatprep.subr.mxu0 0.0
  %73 = vmatpush2.msra.mxu0 0.0
  %74 = vmatprep.subr.mxu0 0.0
  %75 = vmatpush2.msra.mxu0 0.0
  %76 = vmatprep.subr.mxu0 0.0
  %77 = vmatpush2.msra.mxu0 0.0
  %78 = vmatprep.subr.mxu0 0.0
  %79 = vmatpush2.msra.mxu0 0.0
  %80 = vmatprep.subr.mxu0 0.0
  %81 = vmatpush2.msra.mxu0 0.0
  %82 = vmatprep.subr.mxu0 0.0
  %83 = vmatpush2.msra.mxu0 0.0
  %84 = vmatprep.subr.mxu0 0.0
  %85 = vmatpush2.msra.mxu0 0.0
  %86 = vmatprep.subr.mxu0 0.0
  %87 = vmatpush2.msra.mxu0 0.0
  %88 = vmatprep.subr.mxu0 0.0
  %89 = vmatpush2.msra.mxu0 0.0
  %90 = vmatprep.subr.mxu0 0.0
  %91 = vmatpush2.msra.mxu0 0.0
  %92 = vmatprep.mubr.f32.mxu0 0.0
  %93 = vmatmul.mubr.f32.gmra.mxu0 %v11
  %v94 = vpop.f32.mrf.mxu0
  %v95 = vadd.f32 0.0, %v94
  %v96 = vpop.f32.mrf.mxu0
  %97 = vdwg.mxu0
  %98 = vst [vmem:[%s2] sm:$0xff] %v95
  // Predicated region
  $region10: #{_lambda_.1} parent=0 // pred_check
    _
  $region11: #{_lambda_.1} parent=0 // pred_check_branch
    %100 = sbr.rel (0) target = $region13
  $region12: #{_lambda_.1} parent=0 // pred_region
    _
  $region13: #{_lambda_.1} parent=0 // pred_fallthru
    _
  // Predicated region
  $region14: #{_lambda_.1} parent=0 // pred_check
    _
  $region15: #{_lambda_.1} parent=0 // pred_check_branch
    %102 = sbr.rel (0) target = $region17
  $region16: #{_lambda_.1} parent=0 // pred_region
    _
  $region17: #{_lambda_.1} parent=0 // pred_fallthru
    _

</llo_original>
